<compile_context>
chip_gen: v7x
topology: tpu7x:2x2x1
jax: 0.10.0
libtpu: 0.0.40
codegen_flags: <defaults>
</compile_context>

<pallas_src>
import jax
import jax.numpy as jnp
from jax.experimental import pallas as pl
from jax.experimental.pallas import tpu as pltpu


# ----------------------------------------------------------------------------
# helpers
# ----------------------------------------------------------------------------
def _cdiv(a, b):
    return -(-a // b)


def _round_up(a, b):
    return _cdiv(a, b) * b


_TM_MAX = 32  # max modes per block (leading grid axis, no (8,128) constraint)


def _choose_mode_tile(M):
    nsteps = _cdiv(M, _TM_MAX)
    tm = _cdiv(M, nsteps)
    return tm, tm * nsteps


# ----------------------------------------------------------------------------
# MXU path kernel: per-mode batched real matmuls implementing the complex
# channel contraction.  (used when 2*C_in >= 128, i.e. lane-dense channels)
#   ar/ai : (tm, tb, I)        real / imag activations
#   wt    : (tm, I, 2*O)       [wr | wi]
#   wb    : (tm, I, 2*O)       [-wi | wr]
#   o     : (tm, tb, 2*O)      [out_real | out_imag]   (fp32)
# ----------------------------------------------------------------------------
def _specmul_mxu_kernel(ar_ref, ai_ref, wt_ref, wb_ref, o_ref):
    dims = (((2,), (1,)), ((0,), (0,)))  # mbi,mio->mbo
    acc = jax.lax.dot_general(ar_ref[...], wt_ref[...], dimension_numbers=dims,
                              preferred_element_type=jnp.float32)
    acc = acc + jax.lax.dot_general(ai_ref[...], wb_ref[...], dimension_numbers=dims,
                                    preferred_element_type=jnp.float32)
    o_ref[...] = acc.astype(o_ref.dtype)


def _specmul_mxu(ar_t, ai_t, packed, *, tb_cap=256):
    """ar_t/ai_t: (M, B, I) in compute dtype.  Returns (Mp, B, 2*O) float32."""
    M, B, I = ar_t.shape
    w_top, w_bot = packed["w_top"], packed["w_bot"]
    tm, Mp = packed["tm"], packed["Mp"]
    two_o = w_top.shape[-1]
    cdt = w_top.dtype
    align = 16 if cdt == jnp.bfloat16 else 8

    # --- batch tiling (big tiles: HBM-bound kernel, amortize per-step cost) ---
    if B <= align:
        tb, Bp = B, B                       # block == full dim → layout-exempt
    else:
        nsteps = _cdiv(B, tb_cap)
        tb = _round_up(_cdiv(B, nsteps), align)
        Bp = nsteps * tb
    # v7x has 2 TensorCores: avoid a degenerate (1,1) grid when possible.
    if Mp // tm == 1 and Bp // tb == 1 and B >= 2 * align:
        tb = _round_up(_cdiv(B, 2), align)
        Bp = 2 * tb

    if Mp != M or Bp != B:
        ar_t = jnp.pad(ar_t, ((0, Mp - M), (0, Bp - B), (0, 0)))
        ai_t = jnp.pad(ai_t, ((0, Mp - M), (0, Bp - B), (0, 0)))

    grid = (Mp // tm, Bp // tb)  # modes outer → weight block reused across batch

    # vmem limit: actual double-buffered footprint with headroom, capped 48 MiB
    # (v7x physical VMEM is 64 MiB per TC; don't claim all of it).
    itemsize = jnp.dtype(cdt).itemsize
    a_bytes = 2 * tm * tb * I * itemsize
    w_bytes = 2 * tm * I * two_o * itemsize
    o_bytes = tm * tb * two_o * 4
    footprint = 2 * (a_bytes + w_bytes + o_bytes)
    vmem_limit = int(min(48 * 2**20, max(2 * footprint, 16 * 2**20)))

    out = pl.pallas_call(
        _specmul_mxu_kernel,
        out_shape=jax.ShapeDtypeStruct((Mp, Bp, two_o), jnp.float32),
        grid=grid,
        in_specs=[
            pl.BlockSpec((tm, tb, I), lambda m, b: (m, b, 0)),
            pl.BlockSpec((tm, tb, I), lambda m, b: (m, b, 0)),
            pl.BlockSpec((tm, I, two_o), lambda m, b: (m, 0, 0)),
            pl.BlockSpec((tm, I, two_o), lambda m, b: (m, 0, 0)),
        ],
        out_specs=pl.BlockSpec((tm, tb, two_o), lambda m, b: (m, b, 0)),
        compiler_params=pltpu.CompilerParams(
            dimension_semantics=("parallel", "parallel"),
            vmem_limit_bytes=vmem_limit,
        ),
    )(ar_t, ai_t, w_top, w_bot)

    return out[:, :B, :]


# ----------------------------------------------------------------------------
# Small-channel fallback kernel (2*C_in < 128): modes on the lane axis (padded
# to a multiple of 128), pure VPU multiply-accumulate over the channel axis.
#   ar/ai : (tb, I, Mp)
#   wr/wi : (I, O, Mp)
#   or/oi : (tb, O, Mp)   (fp32)
# ----------------------------------------------------------------------------
def _specmul_vpu_kernel(ar_ref, ai_ref, wr_ref, wi_ref, or_ref, oi_ref):
    ar = ar_ref[...]
    ai = ai_ref[...]
    wr = wr_ref[...]
    wi = wi_ref[...]
    I = wr.shape[0]
    acc_r = jnp.zeros(or_ref.shape, jnp.float32)
    acc_i = jnp.zeros(oi_ref.shape, jnp.float32)
    for i in range(I):                       # I is small/static on this path
        a_r = ar[:, i:i + 1, :]              # (tb, 1, Mp)
        a_i = ai[:, i:i + 1, :]
        b_r = wr[i:i + 1, :, :]              # (1, O, Mp)
        b_i = wi[i:i + 1, :, :]
        acc_r = acc_r + a_r * b_r - a_i * b_i
        acc_i = acc_i + a_r * b_i + a_i * b_r
    or_ref[...] = acc_r
    oi_ref[...] = acc_i


def _specmul_vpu(ar, ai, packed):
    """ar/ai: (B, I, M) float32.  Returns two (B, O, Mp) float32 arrays."""
    B, I, M = ar.shape
    wr, wi = packed["wr"], packed["wi"]
    O, Mp = packed["out"], packed["Mp"]

    ar = ar.astype(jnp.float32)
    ai = ai.astype(jnp.float32)
    if Mp != M:
        pad = ((0, 0), (0, 0), (0, Mp - M))
        ar = jnp.pad(ar, pad)
        ai = jnp.pad(ai, pad)

    # batch tile bounded by a modest VMEM budget for the in-kernel temporaries
    row_bytes = O * Mp * 4
    tb_cap = int(min(256, max(8, (1 << 20) // max(row_bytes, 1))))
    if B <= 8:
        tb, Bp = B, B
    else:
        nsteps = _cdiv(B, tb_cap)
        tb = _round_up(_cdiv(B, nsteps), 8)
        Bp = nsteps * tb
    if Bp // tb == 1 and B >= 16:            # keep both v7x TCs busy if possible
        tb = _round_up(_cdiv(B, 2), 8)
        Bp = 2 * tb
    if Bp != B:
        ar = jnp.pad(ar, ((0, Bp - B), (0, 0), (0, 0)))
        ai = jnp.pad(ai, ((0, Bp - B), (0, 0), (0, 0)))

    a_bytes = 2 * tb * I * Mp * 4
    w_bytes = 2 * I * O * Mp * 4
    o_bytes = 2 * tb * O * Mp * 4
    temp_bytes = 6 * tb * O * Mp * 4
    footprint = 2 * (a_bytes + w_bytes + o_bytes) + temp_bytes
    vmem_limit = int(min(48 * 2**20, max(int(1.5 * footprint), 16 * 2**20)))

    out_r, out_i = pl.pallas_call(
        _specmul_vpu_kernel,
        out_shape=(jax.ShapeDtypeStruct((Bp, O, Mp), jnp.float32),
                   jax.ShapeDtypeStruct((Bp, O, Mp), jnp.float32)),
        grid=(Bp // tb,),
        in_specs=[
            pl.BlockSpec((tb, I, Mp), lambda b: (b, 0, 0)),
            pl.BlockSpec((tb, I, Mp), lambda b: (b, 0, 0)),
            pl.BlockSpec((I, O, Mp), lambda b: (0, 0, 0)),
            pl.BlockSpec((I, O, Mp), lambda b: (0, 0, 0)),
        ],
        out_specs=(
            pl.BlockSpec((tb, O, Mp), lambda b: (b, 0, 0)),
            pl.BlockSpec((tb, O, Mp), lambda b: (b, 0, 0)),
        ),
        compiler_params=pltpu.CompilerParams(
            dimension_semantics=("parallel",),
            vmem_limit_bytes=vmem_limit,
        ),
    )(ar, ai, wr, wi)

    return out_r[:B], out_i[:B]


# ----------------------------------------------------------------------------
# Weight packing — depends only on the parameters; call once per parameter
# update and reuse across forward passes (hoisted out of the hot path).
# ----------------------------------------------------------------------------
def pack_spectral_weights(w_real, w_imag, compute_dtype=jnp.bfloat16):
    I, O, M = w_real.shape
    use_mxu = (2 * I >= 128) and (2 * O >= 128)
    if use_mxu:
        tm, Mp = _choose_mode_tile(M)
        wr_t = jnp.transpose(w_real, (2, 0, 1))               # (M, I, O)
        wi_t = jnp.transpose(w_imag, (2, 0, 1))
        w_top = jnp.concatenate([wr_t, wi_t], axis=-1).astype(compute_dtype)
        w_bot = jnp.concatenate([-wi_t, wr_t], axis=-1).astype(compute_dtype)
        if Mp != M:
            w_top = jnp.pad(w_top, ((0, Mp - M), (0, 0), (0, 0)))
            w_bot = jnp.pad(w_bot, ((0, Mp - M), (0, 0), (0, 0)))
        return {"kind": "mxu", "w_top": w_top, "w_bot": w_bot, "tm": tm,
                "Mp": Mp, "modes1": M, "in": I, "out": O,
                "compute_dtype": compute_dtype}
    # small channels → VPU path, modes on lanes, fp32
    Mp = _round_up(M, 128)
    pad = ((0, 0), (0, 0), (0, Mp - M))
    wr_p = jnp.pad(w_real.astype(jnp.float32), pad)
    wi_p = jnp.pad(w_imag.astype(jnp.float32), pad)
    return {"kind": "vpu", "wr": wr_p, "wi": wi_p, "Mp": Mp,
            "modes1": M, "in": I, "out": O, "compute_dtype": jnp.float32}


# ----------------------------------------------------------------------------
# Forward pass matching the PyTorch SpectralConv1d.
# ----------------------------------------------------------------------------
def spectral_conv1d(x, w_real=None, w_imag=None, modes1=None, packed=None,
                    compute_dtype=jnp.bfloat16):
    """x: (B, C_in, N) float32.  Either (w_real, w_imag) or `packed` must be given."""
    B, C_in, N = x.shape
    if packed is None:
        packed = pack_spectral_weights(w_real, w_imag, compute_dtype)
    I, O, M = packed["in"], packed["out"], packed["modes1"]
    if modes1 is None:
        modes1 = M
    assert modes1 == M
    # NOTE: the PyTorch module allocates out_ft with in_channels on dim 1,
    # which silently requires in_channels == out_channels; made explicit here.
    assert I == C_in and O == C_in, "SpectralConv1d requires in_channels == out_channels"
    half = N // 2 + 1
    assert modes1 <= half

    x_ft = jnp.fft.rfft(x, axis=2)            # (B, I, half) complex64
    a = x_ft[:, :, :modes1]
    ar = jnp.real(a)                          # (B, I, M) f32
    ai = jnp.imag(a)

    if packed["kind"] == "mxu":
        cdt = packed["compute_dtype"]
        ar_t = jnp.transpose(ar, (2, 0, 1)).astype(cdt)        # (M, B, I)
        ai_t = jnp.transpose(ai, (2, 0, 1)).astype(cdt)
        out_stack = _specmul_mxu(ar_t, ai_t, packed)           # (Mp, B, 2*O) f32
        Mp = out_stack.shape[0]
        # padded-mode rows are exactly zero (weights zero-padded) → pad/slice to
        # `half` and assemble with one transpose (no scatter).
        if Mp >= half:
            out_low = out_stack[:half]
        else:
            out_low = jnp.pad(out_stack, ((0, half - Mp), (0, 0), (0, 0)))
        t = jnp.transpose(out_low, (1, 2, 0))                  # (B, 2*O, half)
        out_ft = jax.lax.complex(t[:, :O, :], t[:, O:, :])
    else:
        out_r, out_i = _specmul_vpu(ar, ai, packed)            # (B, O, Mp) f32
        Mp = out_r.shape[-1]
        if Mp >= half:
            out_ft = jax.lax.complex(out_r[:, :, :half], out_i[:, :, :half])
        else:
            pad = ((0, 0), (0, 0), (0, half - Mp))
            out_ft = jax.lax.complex(jnp.pad(out_r, pad), jnp.pad(out_i, pad))

    return jnp.fft.irfft(out_ft, n=N, axis=2)                  # (B, C, N) f32


# ----------------------------------------------------------------------------
# self-test
# ----------------------------------------------------------------------------
if __name__ == "__main__":
    key = jax.random.PRNGKey(0)

    def init_params(k, cin, cout, m):
        kwr, kwi = jax.random.split(k)
        scale = 1.0 / (cin * cout)
        wr = scale * jax.random.uniform(kwr, (cin, cout, m), dtype=jnp.float32)
        wi = scale * jax.random.uniform(kwi, (cin, cout, m), dtype=jnp.float32)
        return wr, wi

    def reference(x, wr, wi, m):
        x_ft = jnp.fft.rfft(x, axis=2)
        w_c = (wr + 1j * wi).astype(jnp.complex64)
        low = jnp.einsum('bix,iox->box', x_ft[:, :, :m], w_c)
        half = x.shape[-1] // 2 + 1
        out_ft = jnp.zeros((x.shape[0], wr.shape[1], half), jnp.complex64)
        out_ft = out_ft.at[:, :, :m].set(low)
        return jnp.fft.irfft(out_ft, n=x.shape[-1], axis=2)

    k1, k2, k3, k4 = jax.random.split(key, 4)

    # --- Config A: small channels (2*C < 128) → VPU fallback kernel, fp32 ---
    B, C, N, m = 2, 4, 16, 5
    wr, wi = init_params(k1, C, C, m)
    x = jax.random.normal(k2, (B, C, N), dtype=jnp.float32)
    packed_a = pack_spectral_weights(wr, wi)
    y = jax.block_until_ready(spectral_conv1d(x, modes1=m, packed=packed_a))
    y_ref = reference(x, wr, wi, m)
    assert y.shape == (B, C, N)
    assert jnp.allclose(y, y_ref, atol=1e-5, rtol=1e-5), "VPU path mismatch"

    # --- Config B: lane-dense channels → stacked-real MXU kernel -------------
    B2, C2, N2, m2 = 16, 64, 64, 12
    wr2, wi2 = init_params(k3, C2, C2, m2)
    x2 = jax.random.normal(k4, (B2, C2, N2), dtype=jnp.float32)
    y2_ref = reference(x2, wr2, wi2, m2)

    # fp32 operands: tight check of the kernel math
    packed_f32 = pack_spectral_weights(wr2, wi2, compute_dtype=jnp.float32)
    y2_f32 = jax.block_until_ready(spectral_conv1d(x2, modes1=m2, packed=packed_f32))
    assert y2_f32.shape == (B2, C2, N2)
    assert jnp.allclose(y2_f32, y2_ref, atol=1e-4, rtol=1e-4), "MXU fp32 mismatch"

    # bf16 operands (default, fp32 accumulation): relative-norm check
    packed_bf16 = pack_spectral_weights(wr2, wi2, compute_dtype=jnp.bfloat16)
    y2_bf16 = jax.block_until_ready(spectral_conv1d(x2, modes1=m2, packed=packed_bf16))
    rel = jnp.linalg.norm(y2_bf16 - y2_ref) / (jnp.linalg.norm(y2_ref) + 1e-12)
    assert float(rel) < 5e-2, f"MXU bf16 relative error too large: {float(rel)}"

    print("KERNEL_OK")
</pallas_src>

<mosaic_0001>
module attributes {stable_mosaic.version = 11 : i64} {
  func.func @_specmul_vpu_kernel(%arg0: i32, %arg1: memref<2x4x128xf32, #tpu.memory_space<vmem>>, %arg2: memref<2x4x128xf32, #tpu.memory_space<vmem>>, %arg3: memref<4x4x128xf32, #tpu.memory_space<vmem>>, %arg4: memref<4x4x128xf32, #tpu.memory_space<vmem>>, %arg5: memref<2x4x128xf32, #tpu.memory_space<vmem>>, %arg6: memref<2x4x128xf32, #tpu.memory_space<vmem>>) attributes {dimension_semantics = [#tpu.dimension_semantics<parallel>], iteration_bounds = array<i64: 1>, scalar_prefetch = 0 : i64, scratch_operands = 0 : i64, tpu.core_type = #tpu.core_type<tc>, window_params = [{transform_indices = @transform_0, window_bounds = array<i64: 2, 4, 128>}, {transform_indices = @transform_1, window_bounds = array<i64: 2, 4, 128>}, {pipeline_mode = #tpu.pipeline_mode<synchronous>, transform_indices = @transform_2, window_bounds = array<i64: 4, 4, 128>}, {pipeline_mode = #tpu.pipeline_mode<synchronous>, transform_indices = @transform_3, window_bounds = array<i64: 4, 4, 128>}, {transform_indices = @transform_4, window_bounds = array<i64: 2, 4, 128>}, {transform_indices = @transform_5, window_bounds = array<i64: 2, 4, 128>}]} {
    %c0 = arith.constant 0 : index
    %c0_0 = arith.constant 0 : index
    %c0_1 = arith.constant 0 : index
    %0 = vector.load %arg1[%c0, %c0_0, %c0_1] : memref<2x4x128xf32, #tpu.memory_space<vmem>>, vector<2x4x128xf32>
    %c0_2 = arith.constant 0 : index
    %c0_3 = arith.constant 0 : index
    %c0_4 = arith.constant 0 : index
    %1 = vector.load %arg2[%c0_2, %c0_3, %c0_4] : memref<2x4x128xf32, #tpu.memory_space<vmem>>, vector<2x4x128xf32>
    %c0_5 = arith.constant 0 : index
    %c0_6 = arith.constant 0 : index
    %c0_7 = arith.constant 0 : index
    %2 = vector.load %arg3[%c0_5, %c0_6, %c0_7] : memref<4x4x128xf32, #tpu.memory_space<vmem>>, vector<4x4x128xf32>
    %c0_8 = arith.constant 0 : index
    %c0_9 = arith.constant 0 : index
    %c0_10 = arith.constant 0 : index
    %3 = vector.load %arg4[%c0_8, %c0_9, %c0_10] : memref<4x4x128xf32, #tpu.memory_space<vmem>>, vector<4x4x128xf32>
    %cst = arith.constant 0.000000e+00 : f32
    %4 = vector.broadcast %cst : f32 to vector<2x4x128xf32>
    %cst_11 = arith.constant 0.000000e+00 : f32
    %5 = vector.broadcast %cst_11 : f32 to vector<2x4x128xf32>
    %6 = vector.extract_strided_slice %0 {offsets = [0, 0, 0], sizes = [2, 1, 128], strides = [1, 1, 1]} : vector<2x4x128xf32> to vector<2x1x128xf32>
    %7 = vector.extract_strided_slice %1 {offsets = [0, 0, 0], sizes = [2, 1, 128], strides = [1, 1, 1]} : vector<2x4x128xf32> to vector<2x1x128xf32>
    %8 = vector.extract_strided_slice %2 {offsets = [0, 0, 0], sizes = [1, 4, 128], strides = [1, 1, 1]} : vector<4x4x128xf32> to vector<1x4x128xf32>
    %9 = vector.extract_strided_slice %3 {offsets = [0, 0, 0], sizes = [1, 4, 128], strides = [1, 1, 1]} : vector<4x4x128xf32> to vector<1x4x128xf32>
    %10 = vector.broadcast %6 : vector<2x1x128xf32> to vector<2x4x128xf32>
    %11 = vector.broadcast %8 : vector<1x4x128xf32> to vector<2x4x128xf32>
    %12 = arith.mulf %10, %11 : vector<2x4x128xf32>
    %13 = arith.addf %4, %12 : vector<2x4x128xf32>
    %14 = vector.broadcast %7 : vector<2x1x128xf32> to vector<2x4x128xf32>
    %15 = vector.broadcast %9 : vector<1x4x128xf32> to vector<2x4x128xf32>
    %16 = arith.mulf %14, %15 : vector<2x4x128xf32>
    %17 = arith.subf %13, %16 : vector<2x4x128xf32>
    %18 = vector.broadcast %6 : vector<2x1x128xf32> to vector<2x4x128xf32>
    %19 = vector.broadcast %9 : vector<1x4x128xf32> to vector<2x4x128xf32>
    %20 = arith.mulf %18, %19 : vector<2x4x128xf32>
    %21 = arith.addf %5, %20 : vector<2x4x128xf32>
    %22 = vector.broadcast %7 : vector<2x1x128xf32> to vector<2x4x128xf32>
    %23 = vector.broadcast %8 : vector<1x4x128xf32> to vector<2x4x128xf32>
    %24 = arith.mulf %22, %23 : vector<2x4x128xf32>
    %25 = arith.addf %21, %24 : vector<2x4x128xf32>
    %26 = vector.extract_strided_slice %0 {offsets = [0, 1, 0], sizes = [2, 1, 128], strides = [1, 1, 1]} : vector<2x4x128xf32> to vector<2x1x128xf32>
    %27 = vector.extract_strided_slice %1 {offsets = [0, 1, 0], sizes = [2, 1, 128], strides = [1, 1, 1]} : vector<2x4x128xf32> to vector<2x1x128xf32>
    %28 = vector.extract_strided_slice %2 {offsets = [1, 0, 0], sizes = [1, 4, 128], strides = [1, 1, 1]} : vector<4x4x128xf32> to vector<1x4x128xf32>
    %29 = vector.extract_strided_slice %3 {offsets = [1, 0, 0], sizes = [1, 4, 128], strides = [1, 1, 1]} : vector<4x4x128xf32> to vector<1x4x128xf32>
    %30 = vector.broadcast %26 : vector<2x1x128xf32> to vector<2x4x128xf32>
    %31 = vector.broadcast %28 : vector<1x4x128xf32> to vector<2x4x128xf32>
    %32 = arith.mulf %30, %31 : vector<2x4x128xf32>
    %33 = arith.addf %17, %32 : vector<2x4x128xf32>
    %34 = vector.broadcast %27 : vector<2x1x128xf32> to vector<2x4x128xf32>
    %35 = vector.broadcast %29 : vector<1x4x128xf32> to vector<2x4x128xf32>
    %36 = arith.mulf %34, %35 : vector<2x4x128xf32>
    %37 = arith.subf %33, %36 : vector<2x4x128xf32>
    %38 = vector.broadcast %26 : vector<2x1x128xf32> to vector<2x4x128xf32>
    %39 = vector.broadcast %29 : vector<1x4x128xf32> to vector<2x4x128xf32>
    %40 = arith.mulf %38, %39 : vector<2x4x128xf32>
    %41 = arith.addf %25, %40 : vector<2x4x128xf32>
    %42 = vector.broadcast %27 : vector<2x1x128xf32> to vector<2x4x128xf32>
    %43 = vector.broadcast %28 : vector<1x4x128xf32> to vector<2x4x128xf32>
    %44 = arith.mulf %42, %43 : vector<2x4x128xf32>
    %45 = arith.addf %41, %44 : vector<2x4x128xf32>
    %46 = vector.extract_strided_slice %0 {offsets = [0, 2, 0], sizes = [2, 1, 128], strides = [1, 1, 1]} : vector<2x4x128xf32> to vector<2x1x128xf32>
    %47 = vector.extract_strided_slice %1 {offsets = [0, 2, 0], sizes = [2, 1, 128], strides = [1, 1, 1]} : vector<2x4x128xf32> to vector<2x1x128xf32>
    %48 = vector.extract_strided_slice %2 {offsets = [2, 0, 0], sizes = [1, 4, 128], strides = [1, 1, 1]} : vector<4x4x128xf32> to vector<1x4x128xf32>
    %49 = vector.extract_strided_slice %3 {offsets = [2, 0, 0], sizes = [1, 4, 128], strides = [1, 1, 1]} : vector<4x4x128xf32> to vector<1x4x128xf32>
    %50 = vector.broadcast %46 : vector<2x1x128xf32> to vector<2x4x128xf32>
    %51 = vector.broadcast %48 : vector<1x4x128xf32> to vector<2x4x128xf32>
    %52 = arith.mulf %50, %51 : vector<2x4x128xf32>
    %53 = arith.addf %37, %52 : vector<2x4x128xf32>
    %54 = vector.broadcast %47 : vector<2x1x128xf32> to vector<2x4x128xf32>
    %55 = vector.broadcast %49 : vector<1x4x128xf32> to vector<2x4x128xf32>
    %56 = arith.mulf %54, %55 : vector<2x4x128xf32>
    %57 = arith.subf %53, %56 : vector<2x4x128xf32>
    %58 = vector.broadcast %46 : vector<2x1x128xf32> to vector<2x4x128xf32>
    %59 = vector.broadcast %49 : vector<1x4x128xf32> to vector<2x4x128xf32>
    %60 = arith.mulf %58, %59 : vector<2x4x128xf32>
    %61 = arith.addf %45, %60 : vector<2x4x128xf32>
    %62 = vector.broadcast %47 : vector<2x1x128xf32> to vector<2x4x128xf32>
    %63 = vector.broadcast %48 : vector<1x4x128xf32> to vector<2x4x128xf32>
    %64 = arith.mulf %62, %63 : vector<2x4x128xf32>
    %65 = arith.addf %61, %64 : vector<2x4x128xf32>
    %66 = vector.extract_strided_slice %0 {offsets = [0, 3, 0], sizes = [2, 1, 128], strides = [1, 1, 1]} : vector<2x4x128xf32> to vector<2x1x128xf32>
    %67 = vector.extract_strided_slice %1 {offsets = [0, 3, 0], sizes = [2, 1, 128], strides = [1, 1, 1]} : vector<2x4x128xf32> to vector<2x1x128xf32>
    %68 = vector.extract_strided_slice %2 {offsets = [3, 0, 0], sizes = [1, 4, 128], strides = [1, 1, 1]} : vector<4x4x128xf32> to vector<1x4x128xf32>
    %69 = vector.extract_strided_slice %3 {offsets = [3, 0, 0], sizes = [1, 4, 128], strides = [1, 1, 1]} : vector<4x4x128xf32> to vector<1x4x128xf32>
    %70 = vector.broadcast %66 : vector<2x1x128xf32> to vector<2x4x128xf32>
    %71 = vector.broadcast %68 : vector<1x4x128xf32> to vector<2x4x128xf32>
    %72 = arith.mulf %70, %71 : vector<2x4x128xf32>
    %73 = arith.addf %57, %72 : vector<2x4x128xf32>
    %74 = vector.broadcast %67 : vector<2x1x128xf32> to vector<2x4x128xf32>
    %75 = vector.broadcast %69 : vector<1x4x128xf32> to vector<2x4x128xf32>
    %76 = arith.mulf %74, %75 : vector<2x4x128xf32>
    %77 = arith.subf %73, %76 : vector<2x4x128xf32>
    %78 = vector.broadcast %66 : vector<2x1x128xf32> to vector<2x4x128xf32>
    %79 = vector.broadcast %69 : vector<1x4x128xf32> to vector<2x4x128xf32>
    %80 = arith.mulf %78, %79 : vector<2x4x128xf32>
    %81 = arith.addf %65, %80 : vector<2x4x128xf32>
    %82 = vector.broadcast %67 : vector<2x1x128xf32> to vector<2x4x128xf32>
    %83 = vector.broadcast %68 : vector<1x4x128xf32> to vector<2x4x128xf32>
    %84 = arith.mulf %82, %83 : vector<2x4x128xf32>
    %85 = arith.addf %81, %84 : vector<2x4x128xf32>
    %c0_12 = arith.constant 0 : index
    %c0_13 = arith.constant 0 : index
    %c0_14 = arith.constant 0 : index
    %86 = vector.load %arg5[%c0_12, %c0_13, %c0_14] : memref<2x4x128xf32, #tpu.memory_space<vmem>>, vector<2x4x128xf32>
    tpu.vector_store %arg5[%c0_12, %c0_13, %c0_14], %77 {strides = array<i32>} : memref<2x4x128xf32, #tpu.memory_space<vmem>>, vector<2x4x128xf32>,
    %c0_15 = arith.constant 0 : index
    %c0_16 = arith.constant 0 : index
    %c0_17 = arith.constant 0 : index
    %87 = vector.load %arg6[%c0_15, %c0_16, %c0_17] : memref<2x4x128xf32, #tpu.memory_space<vmem>>, vector<2x4x128xf32>
    tpu.vector_store %arg6[%c0_15, %c0_16, %c0_17], %85 {strides = array<i32>} : memref<2x4x128xf32, #tpu.memory_space<vmem>>, vector<2x4x128xf32>,
    return
  }
  func.func @transform_0(%arg0: i32) -> (i32, i32, i32) {
    %c0_i32 = arith.constant 0 : i32
    %c0_i32_0 = arith.constant 0 : i32
    %c0_i32_1 = arith.constant 0 : i32
    return %arg0, %c0_i32, %c0_i32_0 : i32, i32, i32
  }
  func.func @transform_1(%arg0: i32) -> (i32, i32, i32) {
    %c0_i32 = arith.constant 0 : i32
    %c0_i32_0 = arith.constant 0 : i32
    %c0_i32_1 = arith.constant 0 : i32
    return %arg0, %c0_i32, %c0_i32_0 : i32, i32, i32
  }
  func.func @transform_2(%arg0: i32) -> (i32, i32, i32) {
    %c0_i32 = arith.constant 0 : i32
    %c0_i32_0 = arith.constant 0 : i32
    %c0_i32_1 = arith.constant 0 : i32
    %c0_i32_2 = arith.constant 0 : i32
    return %c0_i32, %c0_i32_0, %c0_i32_1 : i32, i32, i32
  }
  func.func @transform_3(%arg0: i32) -> (i32, i32, i32) {
    %c0_i32 = arith.constant 0 : i32
    %c0_i32_0 = arith.constant 0 : i32
    %c0_i32_1 = arith.constant 0 : i32
    %c0_i32_2 = arith.constant 0 : i32
    return %c0_i32, %c0_i32_0, %c0_i32_1 : i32, i32, i32
  }
  func.func @transform_4(%arg0: i32) -> (i32, i32, i32) {
    %c0_i32 = arith.constant 0 : i32
    %c0_i32_0 = arith.constant 0 : i32
    %c0_i32_1 = arith.constant 0 : i32
    return %arg0, %c0_i32, %c0_i32_0 : i32, i32, i32
  }
  func.func @transform_5(%arg0: i32) -> (i32, i32, i32) {
    %c0_i32 = arith.constant 0 : i32
    %c0_i32_0 = arith.constant 0 : i32
    %c0_i32_1 = arith.constant 0 : i32
    return %arg0, %c0_i32, %c0_i32_0 : i32, i32, i32
  }
}

</mosaic_0001>

<llo_original>
// kernel: tpu_custom_call.1
$region0: #{tpu_custom_call.1}
  #allocation0 [shape = 'u32[]', space=smem, size = 0x4, offset = 0x4, fixed_abs, tag = 'smem constant byte address 0x4 - core index']
  #allocation1 [shape = 'u32[144,128]{1,0:T(1,128)}', space=vmem, size = 0x12000, scoped, tag = 'internal scratch']
  %s0 = inlined_call_operand.hbm [shape: f32[2,4,128], index: 0, kind: input, shape index: {}]
  %s1 = inlined_call_operand.hbm [shape: f32[2,4,128], index: 1, kind: input, shape index: {}]
  %s2 = inlined_call_operand.hbm [shape: f32[4,4,128], index: 2, kind: input, shape index: {}]
  %s3 = inlined_call_operand.hbm [shape: f32[4,4,128], index: 3, kind: input, shape index: {}]
  %s4 = inlined_call_operand.hbm [shape: f32[2,4,128], index: 4, kind: output, shape index: {0}]
  %s5 = inlined_call_operand.hbm [shape: f32[2,4,128], index: 5, kind: output, shape index: {1}]
  %6 = xla_tuple %s4, %s5
  %s7 = sld [smem:[#allocation0]]
  $region50: #{tpu_custom_call.1} parent=0
    _
  %s9 = ssub.s32 1, %s7
  %s10 = scalar_select 0, %s9, %s7
  $region1: #{tpu_custom_call.1} parent=0
    #allocation2 [shape = 'u8[4096]{0}', space=vmem, size = 0x1000, scoped, tag = 'input window, operand 0, single buffered']
    #allocation3 [shape = 's32[1]{0}', space=sflag, size = 0x4, scoped, tag = 'scoped memory for tpu_custom_call.1']
    #allocation4 [shape = 's32[1]{0}', space=sflag, size = 0x4, scoped, tag = 'scoped memory for tpu_custom_call.1']
    #allocation5 [shape = 'u8[4096]{0}', space=vmem, size = 0x1000, scoped, tag = 'input window, operand 1, single buffered']
    #allocation6 [shape = 's32[1]{0}', space=sflag, size = 0x4, scoped, tag = 'scoped memory for tpu_custom_call.1']
    #allocation7 [shape = 'u8[8192]{0}', space=vmem, size = 0x2000, scoped, tag = 'input window, operand 2, single buffered']
    #allocation8 [shape = 'u8[8192]{0}', space=vmem, size = 0x2000, scoped, tag = 'input window, operand 3, single buffered']
    #allocation9 [shape = 's32[1]{0}', space=sflag, size = 0x4, scoped, tag = 'scoped memory for tpu_custom_call.1']
    #allocation10 [shape = 'u8[4096]{0}', space=vmem, size = 0x1000, scoped, tag = 'output window, operand 0, single buffered']
    #allocation11 [shape = 'u8[4096]{0}', space=vmem, size = 0x1000, scoped, tag = 'output window, operand 1, single buffered']
    #allocation12 [shape = 's32[1]{0}', space=sflag, size = 0x4, scoped, tag = 'scoped memory for tpu_custom_call.1']
    %11 = vsyncpa [#allocation3], 0
    %12 = vsyncpa [#allocation6], 0
    %13 = vsyncpa [#allocation9], 0
    %14 = vsyncpa [#allocation4], 0
    %15 = vsyncpa [#allocation12], 0
    // Predicated region
    $region2: #{tpu_custom_call.1} parent=1 // pred_check
      _
    $region3: #{tpu_custom_call.1} parent=1 // pred_check_branch
      %17 = sbr.rel (0) target = $region5
    $region4: #{tpu_custom_call.1} parent=1 // pred_region
      %s19 = ssub.s32 128, 128
      %20 = vsyncadd [#allocation3], %s19
      %s21 = sshll.u32 [#allocation2], 4
      %s22 = int_to_ptr.vmem [resolvable:$true] %s21
      %27 = dma.hbm_to_vmem [thread:$0]  %s0, 128, %s22, [#allocation3], 64, 64, 4
    $region5: #{tpu_custom_call.1} parent=1 // pred_fallthru
      _
    // Predicated region
    $region6: #{tpu_custom_call.1} parent=1 // pred_check
      _
    $region7: #{tpu_custom_call.1} parent=1 // pred_check_branch
      %29 = sbr.rel (0) target = $region9
    $region8: #{tpu_custom_call.1} parent=1 // pred_region
      %s31 = ssub.s32 128, 128
      %32 = vsyncadd [#allocation6], %s31
      %s33 = sshll.u32 [#allocation5], 4
      %s34 = int_to_ptr.vmem [resolvable:$true] %s33
      %39 = dma.hbm_to_vmem [thread:$0]  %s1, 128, %s34, [#allocation6], 64, 64, 4
    $region9: #{tpu_custom_call.1} parent=1 // pred_fallthru
      _
    // Predicated region
    $region10: #{tpu_custom_call.1} parent=1 // pred_check
      _
    $region11: #{tpu_custom_call.1} parent=1 // pred_check_branch
      %41 = sbr.rel (0) target = $region13
    $region12: #{tpu_custom_call.1} parent=1 // pred_region
      %s43 = ssub.s32 256, 256
      %44 = vsyncadd [#allocation6], %s43
      %s45 = sshll.u32 [#allocation7], 4
      %s46 = int_to_ptr.vmem [resolvable:$true] %s45
      %51 = dma.hbm_to_vmem [thread:$0]  %s2, 256, %s46, [#allocation6], 64, 64, 4
    $region13: #{tpu_custom_call.1} parent=1 // pred_fallthru
      _
    // Predicated region
    $region14: #{tpu_custom_call.1} parent=1 // pred_check
      _
    $region15: #{tpu_custom_call.1} parent=1 // pred_check_branch
      %53 = sbr.rel (0) target = $region17
    $region16: #{tpu_custom_call.1} parent=1 // pred_region
      %s55 = ssub.s32 256, 256
      %56 = vsyncadd [#allocation9], %s55
      %s57 = sshll.u32 [#allocation8], 4
      %s58 = int_to_ptr.vmem [resolvable:$true] %s57
      %63 = dma.hbm_to_vmem [thread:$0]  %s3, 256, %s58, [#allocation9], 64, 64, 4
    $region17: #{tpu_custom_call.1} parent=1 // pred_fallthru
      _
    // Predicated region
    $region18: #{tpu_custom_call.1} parent=1 // pred_check
      _
    $region19: #{tpu_custom_call.1} parent=1 // pred_check_branch
      %65 = sbr.rel (0) target = $region21
    $region20: #{tpu_custom_call.1} parent=1 // pred_region
      %66 = dma.done [#allocation3], 128
    $region21: #{tpu_custom_call.1} parent=1 // pred_fallthru
      _
    // Predicated region
    $region22: #{tpu_custom_call.1} parent=1 // pred_check
      _
    $region23: #{tpu_custom_call.1} parent=1 // pred_check_branch
      %68 = sbr.rel (0) target = $region25
    $region24: #{tpu_custom_call.1} parent=1 // pred_region
      %69 = dma.done [#allocation6], 128
    $region25: #{tpu_custom_call.1} parent=1 // pred_fallthru
      _
    // Predicated region
    $region26: #{tpu_custom_call.1} parent=1 // pred_check
      _
    $region27: #{tpu_custom_call.1} parent=1 // pred_check_branch
      %71 = sbr.rel (0) target = $region29
    $region28: #{tpu_custom_call.1} parent=1 // pred_region
      %72 = dma.done [#allocation6], 256
    $region29: #{tpu_custom_call.1} parent=1 // pred_fallthru
      _
    // Predicated region
    $region30: #{tpu_custom_call.1} parent=1 // pred_check
      _
    $region31: #{tpu_custom_call.1} parent=1 // pred_check_branch
      %74 = sbr.rel (0) target = $region33
    $region32: #{tpu_custom_call.1} parent=1 // pred_region
      %75 = dma.done [#allocation9], 256
    $region33: #{tpu_custom_call.1} parent=1 // pred_fallthru
      _
    %v76 = vld [vmem:[#allocation2] sm:$0xf]
    %v77 = vld [vmem:[#allocation2 + $0x4] sm:$0xf]
    %v78 = vld [vmem:[#allocation5] sm:$0xf]
    %v79 = vld [vmem:[#allocation5 + $0x4] sm:$0xf]
    %v80 = vld [vmem:[#allocation7] sm:$0xf]
    %v81 = vld [vmem:[#allocation7 + $0x4] sm:$0xf]
    %v82 = vld [vmem:[#allocation7 + $0x8] sm:$0xf]
    %v83 = vld [vmem:[#allocation7 + $0xc] sm:$0xf]
    %v84 = vld [vmem:[#allocation8] sm:$0xf]
    %v85 = vld [vmem:[#allocation8 + $0x4] sm:$0xf]
    %v86 = vld [vmem:[#allocation8 + $0x8] sm:$0xf]
    %v87 = vld [vmem:[#allocation8 + $0xc] sm:$0xf]
    %v88 = vlaneseq
    %v89 = vshrl.u32 %v88, 7
    %v90 = vsub.s32 0, %v89
    %v91 = vrot.slane %v76, %v90
    %v92 = vlaneseq
    %v93 = vshrl.u32 %v92, 7
    %v94 = vsub.s32 0, %v93
    %v95 = vrot.slane %v77, %v94
    %v96 = vmul.f32 %v91, %v80
    %v97 = vmul.f32 %v95, %v80
    %v98 = vadd.f32 %v96, 0.0
    %v99 = vadd.f32 %v97, 0.0
    %v100 = vlaneseq
    %v101 = vshrl.u32 %v100, 7
    %v102 = vsub.s32 0, %v101
    %v103 = vrot.slane %v78, %v102
    %v104 = vlaneseq
    %v105 = vshrl.u32 %v104, 7
    %v106 = vsub.s32 0, %v105
    %v107 = vrot.slane %v79, %v106
    %v108 = vmul.f32 %v103, %v84
    %v109 = vmul.f32 %v107, %v84
    %v110 = vsub.f32 %v98, %v108
    %v111 = vsub.f32 %v99, %v109
    %v112 = vmul.f32 %v91, %v84
    %v113 = vmul.f32 %v95, %v84
    %v114 = vadd.f32 %v112, 0.0
    %v115 = vadd.f32 %v113, 0.0
    %v116 = vmul.f32 %v103, %v80
    %v117 = vmul.f32 %v107, %v80
    %v118 = vadd.f32 %v114, %v116
    %v119 = vadd.f32 %v115, %v117
    %v120 = vlaneseq
    %v121 = vshrl.u32 %v120, 7
    %v122 = vsub.s32 1, %v121
    %v123 = vrot.slane %v76, %v122
    %v124 = vlaneseq
    %v125 = vshrl.u32 %v124, 7
    %v126 = vsub.s32 1, %v125
    %v127 = vrot.slane %v77, %v126
    %v128 = vmul.f32 %v123, %v81
    %v129 = vmul.f32 %v127, %v81
    %v130 = vadd.f32 %v110, %v128
    %v131 = vadd.f32 %v111, %v129
    %v132 = vlaneseq
    %v133 = vshrl.u32 %v132, 7
    %v134 = vsub.s32 1, %v133
    %v135 = vrot.slane %v78, %v134
    %v136 = vlaneseq
    %v137 = vshrl.u32 %v136, 7
    %v138 = vsub.s32 1, %v137
    %v139 = vrot.slane %v79, %v138
    %v140 = vmul.f32 %v135, %v85
    %v141 = vmul.f32 %v139, %v85
    %v142 = vsub.f32 %v130, %v140
    %v143 = vsub.f32 %v131, %v141
    %v144 = vmul.f32 %v123, %v85
    %v145 = vmul.f32 %v127, %v85
    %v146 = vadd.f32 %v118, %v144
    %v147 = vadd.f32 %v119, %v145
    %v148 = vmul.f32 %v135, %v81
    %v149 = vmul.f32 %v139, %v81
    %v150 = vadd.f32 %v146, %v148
    %v151 = vadd.f32 %v147, %v149
    %v152 = vlaneseq
    %v153 = vshrl.u32 %v152, 7
    %v154 = vsub.s32 2, %v153
    %v155 = vrot.slane %v76, %v154
    %v156 = vlaneseq
    %v157 = vshrl.u32 %v156, 7
    %v158 = vsub.s32 2, %v157
    %v159 = vrot.slane %v77, %v158
    %v160 = vmul.f32 %v155, %v82
    %v161 = vmul.f32 %v159, %v82
    %v162 = vadd.f32 %v142, %v160
    %v163 = vadd.f32 %v143, %v161
    %v164 = vlaneseq
    %v165 = vshrl.u32 %v164, 7
    %v166 = vsub.s32 2, %v165
    %v167 = vrot.slane %v78, %v166
    %v168 = vlaneseq
    %v169 = vshrl.u32 %v168, 7
    %v170 = vsub.s32 2, %v169
    %v171 = vrot.slane %v79, %v170
    %v172 = vmul.f32 %v167, %v86
    %v173 = vmul.f32 %v171, %v86
    %v174 = vsub.f32 %v162, %v172
    %v175 = vsub.f32 %v163, %v173
    %v176 = vmul.f32 %v155, %v86
    %v177 = vmul.f32 %v159, %v86
    %v178 = vadd.f32 %v150, %v176
    %v179 = vadd.f32 %v151, %v177
    %v180 = vmul.f32 %v167, %v82
    %v181 = vmul.f32 %v171, %v82
    %v182 = vadd.f32 %v178, %v180
    %v183 = vadd.f32 %v179, %v181
    %v184 = vlaneseq
    %v185 = vshrl.u32 %v184, 7
    %v186 = vsub.s32 3, %v185
    %v187 = vrot.slane %v76, %v186
    %v188 = vlaneseq
    %v189 = vshrl.u32 %v188, 7
    %v190 = vsub.s32 3, %v189
    %v191 = vrot.slane %v77, %v190
    %v192 = vmul.f32 %v187, %v83
    %v193 = vmul.f32 %v191, %v83
    %v194 = vadd.f32 %v174, %v192
    %v195 = vadd.f32 %v175, %v193
    %v196 = vlaneseq
    %v197 = vshrl.u32 %v196, 7
    %v198 = vsub.s32 3, %v197
    %v199 = vrot.slane %v78, %v198
    %v200 = vlaneseq
    %v201 = vshrl.u32 %v200, 7
    %v202 = vsub.s32 3, %v201
    %v203 = vrot.slane %v79, %v202
    %v204 = vmul.f32 %v199, %v87
    %v205 = vmul.f32 %v203, %v87
    %v206 = vsub.f32 %v194, %v204
    %v207 = vsub.f32 %v195, %v205
    %v208 = vmul.f32 %v187, %v87
    %v209 = vmul.f32 %v191, %v87
    %v210 = vadd.f32 %v182, %v208
    %v211 = vadd.f32 %v183, %v209
    %v212 = vmul.f32 %v199, %v83
    %v213 = vmul.f32 %v203, %v83
    %v214 = vadd.f32 %v210, %v212
    %v215 = vadd.f32 %v211, %v213
    %216 = vst [vmem:[#allocation10] sm:$0xf] %v206
    %217 = vst [vmem:[#allocation10 + $0x4] sm:$0xf] %v207
    %218 = vst [vmem:[#allocation11] sm:$0xf] %v214
    %219 = vst [vmem:[#allocation11 + $0x4] sm:$0xf] %v215
    // Predicated region
    $region34: #{tpu_custom_call.1} parent=1 // pred_check
      _
    $region35: #{tpu_custom_call.1} parent=1 // pred_check_branch
      %221 = sbr.rel (0) target = $region37
    $region36: #{tpu_custom_call.1} parent=1 // pred_region
      %s223 = ssub.s32 128, 128
      %224 = vsyncadd [#allocation4], %s223
      %s225 = sshll.u32 [#allocation10], 4
      %s226 = int_to_ptr.vmem [resolvable:$true] %s225
      %231 = dma.vmem_to_hbm [thread:$0]  %s226, 128, %s4, [#allocation4], 64, 64, 4
    $region37: #{tpu_custom_call.1} parent=1 // pred_fallthru
      _
    // Predicated region
    $region38: #{tpu_custom_call.1} parent=1 // pred_check
      _
    $region39: #{tpu_custom_call.1} parent=1 // pred_check_branch
      %233 = sbr.rel (0) target = $region41
    $region40: #{tpu_custom_call.1} parent=1 // pred_region
      %s235 = ssub.s32 128, 128
      %236 = vsyncadd [#allocation12], %s235
      %s237 = sshll.u32 [#allocation11], 4
      %s238 = int_to_ptr.vmem [resolvable:$true] %s237
      %243 = dma.vmem_to_hbm [thread:$0]  %s238, 128, %s5, [#allocation12], 64, 64, 4
    $region41: #{tpu_custom_call.1} parent=1 // pred_fallthru
      _
    // Predicated region
    $region42: #{tpu_custom_call.1} parent=1 // pred_check
      _
    $region43: #{tpu_custom_call.1} parent=1 // pred_check_branch
      %245 = sbr.rel (0) target = $region45
    $region44: #{tpu_custom_call.1} parent=1 // pred_region
      %246 = dma.done [#allocation4], 128
    $region45: #{tpu_custom_call.1} parent=1 // pred_fallthru
      _
    // Predicated region
    $region46: #{tpu_custom_call.1} parent=1 // pred_check
      _
    $region47: #{tpu_custom_call.1} parent=1 // pred_check_branch
      %248 = sbr.rel (0) target = $region49
    $region48: #{tpu_custom_call.1} parent=1 // pred_region
      %249 = dma.done [#allocation12], 128
    $region49: #{tpu_custom_call.1} parent=1 // pred_fallthru
      _
    %250 = vsyncpa [#allocation3], 1
    %251 = vsyncpa [#allocation6], 1
    %252 = vsyncpa [#allocation9], 1
    %253 = vsyncpa [#allocation4], 1
    %254 = vsyncpa [#allocation12], 1

</llo_original>
